<compile_context>
chip_gen: v6e
topology: v6e:2x2x1
jax: 0.10.0
libtpu: 0.0.40
codegen_flags: <defaults>
</compile_context>

<pallas_src>
import jax
import jax.numpy as jnp
from jax.experimental import pallas as pl
from jax.experimental.pallas import tpu as pltpu


def _round_up(x, m):
    return (x + m - 1) // m * m


def _choose_batch_tiling(B, max_tile_b):
    """Returns (tile_b, n_tiles, Bp)."""
    Bp8 = _round_up(B, 8)
    if Bp8 <= 128:
        # Tiny batch: single grid step, minimal 8-row-aligned tile.
        return Bp8, 1, Bp8
    # At least 2 grid steps so the "parallel" grid axis can shard across the
    # two v7x TensorCores; size the tile to the batch (rounded to 128 so the
    # lane-dense output stores stay unmasked) to avoid a mostly-padded tail.
    n_tiles = max(2, pl.cdiv(B, max_tile_b))
    tile_b = _round_up(pl.cdiv(B, n_tiles), 128)
    return tile_b, n_tiles, tile_b * n_tiles


def _head_kernel(e1_ref, e2_ref, w1_ref, b1_ref, w3a_ref, w3b_ref, b3_ref,
                 out_ref):
    tb = out_ref.shape[-1]                       # batch tile size (static)

    w1 = w1_ref[...]                             # resident (Ep, Hp) bf16 tile
    h1 = jnp.dot(e1_ref[...], w1, preferred_element_type=jnp.float32)
    h2 = jnp.dot(e2_ref[...], w1, preferred_element_type=jnp.float32)
    h1 = h1 + b1_ref[...]
    h2 = h2 + b1_ref[...]

    # LeakyReLU(negative_slope=0.1): max(h, 0.1*h) — single VALU op.
    h1 = jnp.maximum(h1, 0.1 * h1)
    h2 = jnp.maximum(h2, 0.1 * h2)
    # TODO(synk): dropout1 (p=0.2) is identity here (inference semantics).

    diff = jnp.abs(h1 - h2)
    summ = h1 + h2

    # Linear(2H -> 1) as VPU multiply + lane (XLU) reduction:
    #   feat @ W3 == sum(diff * W3[:H] + summ * W3[H:], axis=-1)
    logit = jnp.sum(diff * w3a_ref[...] + summ * w3b_ref[...], axis=-1)  # (tb,)
    logit = logit.reshape(1, tb) + b3_ref[...]                           # (1, tb)

    out_ref[...] = 3.0 * jax.nn.sigmoid(logit) + 1.0


def prepare_head_params(w1, b1, w3, b3, *, compute_dtype=jnp.bfloat16):
    """One-time parameter prep: lane-axis zero padding + compute-dtype cast.

    Call once per model (not per batch). Padding is numerically exact:
    padded embedding columns hit zero W1 rows, padded H columns carry zero
    W3 weights.
    """
    E, H = w1.shape
    assert w3.shape == (2 * H, 1) and b1.shape == (H,)
    Ep = _round_up(E, 128)
    Hp = _round_up(H, 128)
    f32 = jnp.float32

    w1_p = (jnp.zeros((Ep, Hp), compute_dtype)
            .at[:E, :H].set(w1.astype(compute_dtype)))
    b1_p = jnp.zeros((1, Hp), f32).at[0, :H].set(b1.astype(f32))
    w3a = jnp.zeros((1, Hp), f32).at[0, :H].set(w3[:H, 0].astype(f32))
    w3b = jnp.zeros((1, Hp), f32).at[0, :H].set(w3[H:, 0].astype(f32))
    b3_p = b3.reshape(1, 1).astype(f32)

    return dict(w1=w1_p, b1=b1_p, w3a=w3a, w3b=w3b, b3=b3_p,
                E=E, H=H, Ep=Ep, Hp=Hp, compute_dtype=compute_dtype)


def similarity_regressor_head(e1, e2, params, *, max_tile_b=512):
    """e1, e2: (B, E) [CLS] embeddings. params: prepare_head_params() output.

    Returns (B, 1) float32.
    """
    B, E = e1.shape
    assert e2.shape == (B, E) and E == params["E"]
    Ep, Hp = params["Ep"], params["Hp"]
    cdt = params["compute_dtype"]
    itemsize = jnp.dtype(cdt).itemsize
    f32 = jnp.float32

    tile_b, n_tiles, Bp = _choose_batch_tiling(B, max_tile_b)

    # Cast FIRST (halves any padding traffic); pad only if actually needed.
    def prep(e):
        e = e.astype(cdt)
        if Bp != B or Ep != E:
            e = jnp.pad(e, ((0, Bp - B), (0, Ep - E)))
        return e

    e1_p = prep(e1)
    e2_p = prep(e2)

    # Block specs. Weights/biases use constant index_maps -> DMA'd once and
    # kept resident; embeddings stream tile-by-tile; output is lane-dense.
    e_spec = pl.BlockSpec((tile_b, Ep), lambda i: (i, 0))
    w1_spec = pl.BlockSpec((Ep, Hp), lambda i: (0, 0))
    row_spec = pl.BlockSpec((1, Hp), lambda i: (0, 0))
    b3_spec = pl.BlockSpec((1, 1), lambda i: (0, 0))
    out_spec = pl.BlockSpec((1, tile_b), lambda i: (0, i))

    # Advisory cost estimate so XLA schedules surrounding ops sensibly.
    cost = pl.CostEstimate(
        flops=2 * 2 * Bp * Ep * Hp,
        transcendentals=Bp,                      # sigmoid exp per output row
        bytes_accessed=(2 * Bp * Ep * itemsize   # e1, e2 streams
                        + Ep * Hp * itemsize     # W1
                        + 3 * Hp * 4 + 4         # b1, w3a, w3b, b3
                        + Bp * 4),               # output
    )

    # VMEM budget: double-buffered embedding tiles + W1 + f32 temporaries,
    # plus slack; clamped to [32, 48] MiB (safe on v5e/v6e/v7x physical VMEM).
    vmem_est = (2 * 2 * tile_b * Ep * itemsize   # e1, e2, double-buffered
                + 2 * Ep * Hp * itemsize         # W1 (allow double buffer)
                + 8 * tile_b * Hp * 4            # f32 h1/h2/diff/summ headroom
                + 2 * tile_b * 4                 # output blocks
                + (4 << 20))                     # slack
    vmem_limit = int(min(max(vmem_est, 32 << 20), 48 << 20))

    out = pl.pallas_call(
        _head_kernel,
        out_shape=jax.ShapeDtypeStruct((1, Bp), f32),
        grid_spec=pltpu.PrefetchScalarGridSpec(
            num_scalar_prefetch=0,
            grid=(n_tiles,),
            in_specs=[e_spec, e_spec, w1_spec, row_spec, row_spec, row_spec,
                      b3_spec],
            out_specs=out_spec,
        ),
        compiler_params=pltpu.CompilerParams(
            dimension_semantics=("parallel",),
            vmem_limit_bytes=vmem_limit,
        ),
        cost_estimate=cost,
    )(e1_p, e2_p, params["w1"], params["b1"], params["w3a"], params["w3b"],
      params["b3"])

    return out.reshape(Bp)[:B].reshape(B, 1)


def _reference(e1, e2, w1, b1, w3, b3):
    def common(e):
        h = e @ w1 + b1
        return jnp.where(h > 0, h, 0.1 * h)
    h1, h2 = common(e1), common(e2)
    feat = jnp.concatenate([jnp.abs(h1 - h2), h1 + h2], axis=-1)
    return 3.0 * jax.nn.sigmoid(feat @ w3 + b3) + 1.0


if __name__ == "__main__":
    # Small shapes consistent with the module (embed_size / hidden_size scaled
    # down). B=10 exercises batch padding; H=64 exercises lane padding.
    B, E, H = 10, 128, 64

    key = jax.random.PRNGKey(0)
    k_e1, k_e2, k_w1, k_b1, k_w3, k_b3 = jax.random.split(key, 6)

    # Synthetic encoder [CLS] embeddings for the two inputs.
    e1 = jax.random.normal(k_e1, (B, E), dtype=jnp.float32)
    e2 = jax.random.normal(k_e2, (B, E), dtype=jnp.float32)

    # Deterministic synthetic parameters (shapes from the nn.Linear definitions).
    w1 = jax.random.normal(k_w1, (E, H), dtype=jnp.float32) * 0.05
    b1 = jax.random.normal(k_b1, (H,), dtype=jnp.float32) * 0.05
    w3 = jax.random.normal(k_w3, (2 * H, 1), dtype=jnp.float32) * 0.05
    b3 = jax.random.normal(k_b3, (1,), dtype=jnp.float32) * 0.05

    params = prepare_head_params(w1, b1, w3, b3)          # hoisted, once
    out = similarity_regressor_head(e1, e2, params)
    out = jax.block_until_ready(out)
    assert out.shape == (B, 1)

    # 1) Tight check against a bf16-rounded-operand reference (the kernel's
    #    matmul compute dtype; f32 accumulation in both).
    bf = lambda a: a.astype(jnp.bfloat16).astype(jnp.float32)
    ref_bf = _reference(bf(e1), bf(e2), bf(w1), b1, w3, b3)
    assert jnp.allclose(out, ref_bf, atol=1e-4, rtol=1e-4), \
        float(jnp.max(jnp.abs(out - ref_bf)))

    # 2) Looser check against the true f32 reference, so the intentional bf16
    #    precision drop is bounded against the PyTorch-f32 semantics too.
    ref_f32 = _reference(e1, e2, w1, b1, w3, b3)
    assert jnp.allclose(out, ref_f32, atol=2e-2, rtol=2e-2), \
        float(jnp.max(jnp.abs(out - ref_f32)))

    print("KERNEL_OK")
</pallas_src>

<mosaic_0001>
module attributes {stable_mosaic.version = 11 : i64} {
  func.func @_head_kernel(%arg0: i32, %arg1: memref<16x128xbf16, #tpu.memory_space<vmem>>, %arg2: memref<16x128xbf16, #tpu.memory_space<vmem>>, %arg3: memref<128x128xbf16, #tpu.memory_space<vmem>>, %arg4: memref<1x128xf32, #tpu.memory_space<vmem>>, %arg5: memref<1x128xf32, #tpu.memory_space<vmem>>, %arg6: memref<1x128xf32, #tpu.memory_space<vmem>>, %arg7: memref<1x1xf32, #tpu.memory_space<vmem>>, %arg8: memref<1x16xf32, #tpu.memory_space<vmem>>) attributes {dimension_semantics = [#tpu.dimension_semantics<parallel>], iteration_bounds = array<i64: 1>, scalar_prefetch = 0 : i64, scratch_operands = 0 : i64, tpu.core_type = #tpu.core_type<tc>, window_params = [{transform_indices = @transform_0, window_bounds = array<i64: 16, 128>}, {transform_indices = @transform_1, window_bounds = array<i64: 16, 128>}, {pipeline_mode = #tpu.pipeline_mode<synchronous>, transform_indices = @transform_2, window_bounds = array<i64: 128, 128>}, {pipeline_mode = #tpu.pipeline_mode<synchronous>, transform_indices = @transform_3, window_bounds = array<i64: 1, 128>}, {pipeline_mode = #tpu.pipeline_mode<synchronous>, transform_indices = @transform_4, window_bounds = array<i64: 1, 128>}, {pipeline_mode = #tpu.pipeline_mode<synchronous>, transform_indices = @transform_5, window_bounds = array<i64: 1, 128>}, {pipeline_mode = #tpu.pipeline_mode<synchronous>, transform_indices = @transform_6, window_bounds = array<i64: 1, 1>}, {transform_indices = @transform_7, window_bounds = array<i64: 1, 16>}]} {
    %c0 = arith.constant 0 : index
    %c0_0 = arith.constant 0 : index
    %0 = vector.load %arg3[%c0, %c0_0] : memref<128x128xbf16, #tpu.memory_space<vmem>>, vector<128x128xbf16>
    %c0_1 = arith.constant 0 : index
    %c0_2 = arith.constant 0 : index
    %1 = vector.load %arg1[%c0_1, %c0_2] : memref<16x128xbf16, #tpu.memory_space<vmem>>, vector<16x128xbf16>
    %cst = arith.constant dense<0.000000e+00> : vector<16x128xf32>
    %2 = tpu.matmul %1, %0, %cst {dimension_numbers = #tpu.dot_dimension_numbers<[1], [0], [0], [1], [0, 0, 1, 1], [], []>} : vector<16x128xbf16>, vector<128x128xbf16>, vector<16x128xf32> -> vector<16x128xf32>
    %c0_3 = arith.constant 0 : index
    %c0_4 = arith.constant 0 : index
    %3 = vector.load %arg2[%c0_3, %c0_4] : memref<16x128xbf16, #tpu.memory_space<vmem>>, vector<16x128xbf16>
    %cst_5 = arith.constant dense<0.000000e+00> : vector<16x128xf32>
    %4 = tpu.matmul %3, %0, %cst_5 {dimension_numbers = #tpu.dot_dimension_numbers<[1], [0], [0], [1], [0, 0, 1, 1], [], []>} : vector<16x128xbf16>, vector<128x128xbf16>, vector<16x128xf32> -> vector<16x128xf32>
    %c0_6 = arith.constant 0 : index
    %c0_7 = arith.constant 0 : index
    %5 = vector.load %arg4[%c0_6, %c0_7] : memref<1x128xf32, #tpu.memory_space<vmem>>, vector<1x128xf32>
    %6 = vector.broadcast %5 : vector<1x128xf32> to vector<16x128xf32>
    %7 = arith.addf %2, %6 : vector<16x128xf32>
    %c0_8 = arith.constant 0 : index
    %c0_9 = arith.constant 0 : index
    %8 = vector.load %arg4[%c0_8, %c0_9] : memref<1x128xf32, #tpu.memory_space<vmem>>, vector<1x128xf32>
    %9 = vector.broadcast %8 : vector<1x128xf32> to vector<16x128xf32>
    %10 = arith.addf %4, %9 : vector<16x128xf32>
    %cst_10 = arith.constant 1.000000e-01 : f32
    %11 = vector.broadcast %cst_10 : f32 to vector<16x128xf32>
    %12 = arith.mulf %11, %7 : vector<16x128xf32>
    %13 = arith.maximumf %7, %12 : vector<16x128xf32>
    %cst_11 = arith.constant 1.000000e-01 : f32
    %14 = vector.broadcast %cst_11 : f32 to vector<16x128xf32>
    %15 = arith.mulf %14, %10 : vector<16x128xf32>
    %16 = arith.maximumf %10, %15 : vector<16x128xf32>
    %17 = arith.subf %13, %16 : vector<16x128xf32>
    %18 = math.absf %17 : vector<16x128xf32>
    %19 = arith.addf %13, %16 : vector<16x128xf32>
    %c0_12 = arith.constant 0 : index
    %c0_13 = arith.constant 0 : index
    %20 = vector.load %arg5[%c0_12, %c0_13] : memref<1x128xf32, #tpu.memory_space<vmem>>, vector<1x128xf32>
    %21 = vector.broadcast %20 : vector<1x128xf32> to vector<16x128xf32>
    %22 = arith.mulf %18, %21 : vector<16x128xf32>
    %c0_14 = arith.constant 0 : index
    %c0_15 = arith.constant 0 : index
    %23 = vector.load %arg6[%c0_14, %c0_15] : memref<1x128xf32, #tpu.memory_space<vmem>>, vector<1x128xf32>
    %24 = vector.broadcast %23 : vector<1x128xf32> to vector<16x128xf32>
    %25 = arith.mulf %19, %24 : vector<16x128xf32>
    %26 = arith.addf %22, %25 : vector<16x128xf32>
    %cst_16 = arith.constant dense<0.000000e+00> : vector<16xf32>
    %27 = vector.multi_reduction <add>, %26, %cst_16 [1] : vector<16x128xf32> to vector<16xf32>
    %28 = vector.shape_cast %27 : vector<16xf32> to vector<1x16xf32>
    %c0_17 = arith.constant 0 : index
    %c0_18 = arith.constant 0 : index
    %29 = vector.load %arg7[%c0_17, %c0_18] : memref<1x1xf32, #tpu.memory_space<vmem>>, vector<1x1xf32>
    %30 = vector.broadcast %29 : vector<1x1xf32> to vector<1x16xf32>
    %31 = arith.addf %28, %30 : vector<1x16xf32>
    %32 = arith.negf %31 : vector<1x16xf32>
    %33 = math.exp %32 : vector<1x16xf32>
    %cst_19 = arith.constant 1.000000e+00 : f32
    %34 = vector.broadcast %cst_19 : f32 to vector<1x16xf32>
    %35 = arith.addf %34, %33 : vector<1x16xf32>
    %36 = arith.divf %34, %35 : vector<1x16xf32>
    %cst_20 = arith.constant 3.000000e+00 : f32
    %37 = vector.broadcast %cst_20 : f32 to vector<1x16xf32>
    %38 = arith.mulf %37, %36 : vector<1x16xf32>
    %cst_21 = arith.constant 1.000000e+00 : f32
    %39 = vector.broadcast %cst_21 : f32 to vector<1x16xf32>
    %40 = arith.addf %38, %39 : vector<1x16xf32>
    %c0_22 = arith.constant 0 : index
    %c0_23 = arith.constant 0 : index
    %41 = vector.load %arg8[%c0_22, %c0_23] : memref<1x16xf32, #tpu.memory_space<vmem>>, vector<1x16xf32>
    tpu.vector_store %arg8[%c0_22, %c0_23], %40 {strides = array<i32>} : memref<1x16xf32, #tpu.memory_space<vmem>>, vector<1x16xf32>,
    return
  }
  func.func @transform_0(%arg0: i32) -> (i32, i32) {
    %c0_i32 = arith.constant 0 : i32
    %c0_i32_0 = arith.constant 0 : i32
    return %arg0, %c0_i32 : i32, i32
  }
  func.func @transform_1(%arg0: i32) -> (i32, i32) {
    %c0_i32 = arith.constant 0 : i32
    %c0_i32_0 = arith.constant 0 : i32
    return %arg0, %c0_i32 : i32, i32
  }
  func.func @transform_2(%arg0: i32) -> (i32, i32) {
    %c0_i32 = arith.constant 0 : i32
    %c0_i32_0 = arith.constant 0 : i32
    %c0_i32_1 = arith.constant 0 : i32
    return %c0_i32, %c0_i32_0 : i32, i32
  }
  func.func @transform_3(%arg0: i32) -> (i32, i32) {
    %c0_i32 = arith.constant 0 : i32
    %c0_i32_0 = arith.constant 0 : i32
    %c0_i32_1 = arith.constant 0 : i32
    return %c0_i32, %c0_i32_0 : i32, i32
  }
  func.func @transform_4(%arg0: i32) -> (i32, i32) {
    %c0_i32 = arith.constant 0 : i32
    %c0_i32_0 = arith.constant 0 : i32
    %c0_i32_1 = arith.constant 0 : i32
    return %c0_i32, %c0_i32_0 : i32, i32
  }
  func.func @transform_5(%arg0: i32) -> (i32, i32) {
    %c0_i32 = arith.constant 0 : i32
    %c0_i32_0 = arith.constant 0 : i32
    %c0_i32_1 = arith.constant 0 : i32
    return %c0_i32, %c0_i32_0 : i32, i32
  }
  func.func @transform_6(%arg0: i32) -> (i32, i32) {
    %c0_i32 = arith.constant 0 : i32
    %c0_i32_0 = arith.constant 0 : i32
    %c0_i32_1 = arith.constant 0 : i32
    return %c0_i32, %c0_i32_0 : i32, i32
  }
  func.func @transform_7(%arg0: i32) -> (i32, i32) {
    %c0_i32 = arith.constant 0 : i32
    %c0_i32_0 = arith.constant 0 : i32
    return %c0_i32, %arg0 : i32, i32
  }
}

</mosaic_0001>

<llo_original>
// kernel: tpu_custom_call.1
$region0: #{tpu_custom_call.1}
  #allocation0 [shape = 'u32[]', space=smem, size = 0x4, offset = 0x4, fixed_abs, tag = 'smem constant byte address 0x4 - core index']
  #allocation1 [shape = 'u32[144,128]{1,0:T(1,128)}', space=vmem, size = 0x12000, scoped, tag = 'internal scratch']
  #allocation2 [shape = 'f32[1,1]{1,0:T(1,128)S(1)}', space=vmem, size = 0x200, scoped, tag = 'scoped memory for tpu_custom_call.1']
  %s0 = inlined_call_operand.hbm [shape: bf16[16,128], index: 0, kind: input, shape index: {}]
  %s1 = inlined_call_operand.hbm [shape: bf16[16,128], index: 1, kind: input, shape index: {}]
  %s2 = inlined_call_operand.hbm [shape: bf16[128,128], index: 2, kind: input, shape index: {}]
  %s3 = inlined_call_operand.vmem [shape: f32[1,128], index: 3, kind: input, shape index: {}]
  %s4 = inlined_call_operand.vmem [shape: f32[1,128], index: 4, kind: input, shape index: {}]
  %s5 = inlined_call_operand.vmem [shape: f32[1,128], index: 5, kind: input, shape index: {}]
  %s6 = inlined_call_operand.<no memory space> [shape: f32[1,1], index: 6, kind: input, shape index: {}]
  %s7 = inlined_call_operand.hbm [shape: f32[1,16], index: 7, kind: output, shape index: {}]
  %s8 = sld [smem:[#allocation0]]
  $region50: #{tpu_custom_call.1} parent=0
    _
  %s10 = ssub.s32 1, %s8
  %s11 = scalar_select 0, %s10, %s8
  %v12 = vstv %s6
  %13 = vst [vmem:[#allocation2] sm:$0x1] %v12
  $region1: #{tpu_custom_call.1} parent=0
    #allocation3 [shape = 'u8[4096]{0}', space=vmem, size = 0x1000, scoped, tag = 'input window, operand 0, single buffered']
    #allocation4 [shape = 's32[1]{0}', space=sflag, size = 0x4, scoped, tag = 'scoped memory for tpu_custom_call.1']
    #allocation5 [shape = 's32[1]{0}', space=sflag, size = 0x4, scoped, tag = 'scoped memory for tpu_custom_call.1']
    #allocation6 [shape = 'u8[4096]{0}', space=vmem, size = 0x1000, scoped, tag = 'input window, operand 1, single buffered']
    #allocation7 [shape = 's32[1]{0}', space=sflag, size = 0x4, scoped, tag = 'scoped memory for tpu_custom_call.1']
    #allocation8 [shape = 'u8[32768]{0}', space=vmem, size = 0x8000, scoped, tag = 'input window, operand 2, single buffered']
    #allocation9 [shape = 'u8[512]{0}', space=vmem, size = 0x400, scoped, tag = 'output window, operand 0, single buffered']
    %14 = vsyncpa [#allocation4], 0
    %15 = vsyncpa [#allocation7], 0
    %16 = vsyncpa [#allocation5], 0
    // Predicated region
    $region2: #{tpu_custom_call.1} parent=1 // pred_check
      _
    $region3: #{tpu_custom_call.1} parent=1 // pred_check_branch
      %18 = sbr.rel (0) target = $region5
    $region4: #{tpu_custom_call.1} parent=1 // pred_region
      %s20 = ssub.s32 128, 128
      %21 = vsyncadd [#allocation4], %s20
      %s22 = sshll.u32 [#allocation3], 4
      %s23 = int_to_ptr.vmem [resolvable:$true] %s22
      %28 = dma.hbm_to_vmem [thread:$0]  %s0, 128, %s23, [#allocation4], 64, 64, 4
    $region5: #{tpu_custom_call.1} parent=1 // pred_fallthru
      _
    // Predicated region
    $region6: #{tpu_custom_call.1} parent=1 // pred_check
      _
    $region7: #{tpu_custom_call.1} parent=1 // pred_check_branch
      %30 = sbr.rel (0) target = $region9
    $region8: #{tpu_custom_call.1} parent=1 // pred_region
      %s32 = ssub.s32 128, 128
      %33 = vsyncadd [#allocation7], %s32
      %s34 = sshll.u32 [#allocation6], 4
      %s35 = int_to_ptr.vmem [resolvable:$true] %s34
      %40 = dma.hbm_to_vmem [thread:$0]  %s1, 128, %s35, [#allocation7], 64, 64, 4
    $region9: #{tpu_custom_call.1} parent=1 // pred_fallthru
      _
    // Predicated region
    $region10: #{tpu_custom_call.1} parent=1 // pred_check
      _
    $region11: #{tpu_custom_call.1} parent=1 // pred_check_branch
      %42 = sbr.rel (0) target = $region13
    $region12: #{tpu_custom_call.1} parent=1 // pred_region
      %s44 = ssub.s32 1024, 1024
      %45 = vsyncadd [#allocation7], %s44
      %s46 = sshll.u32 [#allocation8], 4
      %s47 = int_to_ptr.vmem [resolvable:$true] %s46
      %52 = dma.hbm_to_vmem [thread:$0]  %s2, 1024, %s47, [#allocation7], 64, 64, 4
    $region13: #{tpu_custom_call.1} parent=1 // pred_fallthru
      _
    // Predicated region
    $region14: #{tpu_custom_call.1} parent=1 // pred_check
      _
    $region15: #{tpu_custom_call.1} parent=1 // pred_check_branch
      %54 = sbr.rel (0) target = $region17
    $region16: #{tpu_custom_call.1} parent=1 // pred_region
      _
    $region17: #{tpu_custom_call.1} parent=1 // pred_fallthru
      _
    // Predicated region
    $region18: #{tpu_custom_call.1} parent=1 // pred_check
      _
    $region19: #{tpu_custom_call.1} parent=1 // pred_check_branch
      %56 = sbr.rel (0) target = $region21
    $region20: #{tpu_custom_call.1} parent=1 // pred_region
      _
    $region21: #{tpu_custom_call.1} parent=1 // pred_fallthru
      _
    // Predicated region
    $region22: #{tpu_custom_call.1} parent=1 // pred_check
      _
    $region23: #{tpu_custom_call.1} parent=1 // pred_check_branch
      %58 = sbr.rel (0) target = $region25
    $region24: #{tpu_custom_call.1} parent=1 // pred_region
      _
    $region25: #{tpu_custom_call.1} parent=1 // pred_fallthru
      _
    // Predicated region
    $region26: #{tpu_custom_call.1} parent=1 // pred_check
      _
    $region27: #{tpu_custom_call.1} parent=1 // pred_check_branch
      %60 = sbr.rel (0) target = $region29
    $region28: #{tpu_custom_call.1} parent=1 // pred_region
      _
    $region29: #{tpu_custom_call.1} parent=1 // pred_fallthru
      _
    // Predicated region
    $region30: #{tpu_custom_call.1} parent=1 // pred_check
      _
    $region31: #{tpu_custom_call.1} parent=1 // pred_check_branch
      %62 = sbr.rel (0) target = $region33
    $region32: #{tpu_custom_call.1} parent=1 // pred_region
      %63 = dma.done [#allocation4], 128
    $region33: #{tpu_custom_call.1} parent=1 // pred_fallthru
      _
    // Predicated region
    $region34: #{tpu_custom_call.1} parent=1 // pred_check
      _
    $region35: #{tpu_custom_call.1} parent=1 // pred_check_branch
      %65 = sbr.rel (0) target = $region37
    $region36: #{tpu_custom_call.1} parent=1 // pred_region
      %66 = dma.done [#allocation7], 128
    $region37: #{tpu_custom_call.1} parent=1 // pred_fallthru
      _
    // Predicated region
    $region38: #{tpu_custom_call.1} parent=1 // pred_check
      _
    $region39: #{tpu_custom_call.1} parent=1 // pred_check_branch
      %68 = sbr.rel (0) target = $region41
    $region40: #{tpu_custom_call.1} parent=1 // pred_region
      %69 = dma.done [#allocation7], 1024
    $region41: #{tpu_custom_call.1} parent=1 // pred_fallthru
      _
    %v71 = vld [vmem:[#allocation8] sm:$0xf]
    %v72 = vld [vmem:[#allocation8 + $0x4] sm:$0xf]
    %v73 = vld [vmem:[#allocation8 + $0x8] sm:$0xf]
    %v74 = vld [vmem:[#allocation8 + $0xc] sm:$0xf]
    %v75 = vld [vmem:[#allocation8 + $0x10] sm:$0xf]
    %v76 = vld [vmem:[#allocation8 + $0x14] sm:$0xf]
    %v77 = vld [vmem:[#allocation8 + $0x18] sm:$0xf]
    %v78 = vld [vmem:[#allocation8 + $0x1c] sm:$0xf]
    %v79 = vld [vmem:[#allocation8 + $0x20] sm:$0xf]
    %v80 = vld [vmem:[#allocation8 + $0x24] sm:$0xf]
    %v81 = vld [vmem:[#allocation8 + $0x28] sm:$0xf]
    %v82 = vld [vmem:[#allocation8 + $0x2c] sm:$0xf]
    %v83 = vld [vmem:[#allocation8 + $0x30] sm:$0xf]
    %v84 = vld [vmem:[#allocation8 + $0x34] sm:$0xf]
    %v85 = vld [vmem:[#allocation8 + $0x38] sm:$0xf]
    %v86 = vld [vmem:[#allocation8 + $0x3c] sm:$0xf]
    %v87 = vld [vmem:[#allocation3] sm:$0xf]
    %v88 = vld [vmem:[#allocation3 + $0x4] sm:$0xf]
    %v89 = vld [vmem:[#allocation6] sm:$0xf]
    %v90 = vld [vmem:[#allocation6 + $0x4] sm:$0xf]
    %v91 = vld [vmem:[%s3] sm:$0x1]
    %v93 = vlaneseq
    %v94 = vshrl.u32 %v93, 7
    %v95 = vsub.s32 0, %v94
    %v96 = vrot.slane %v91, %v95
    %v100 = vunpack.c.l.b16 %v87
    %v101 = vunpack.c.l.b16 %v88
    %v102 = vpack.c.b16 %v101, %v100
    %v120 = vunpack.c.l.b16 %v71
    %v121 = vunpack.c.l.b16 %v72
    %v122 = vunpack.c.l.b16 %v73
    %v123 = vunpack.c.l.b16 %v74
    %v124 = vunpack.c.l.b16 %v75
    %v125 = vunpack.c.l.b16 %v76
    %v126 = vunpack.c.l.b16 %v77
    %v127 = vunpack.c.l.b16 %v78
    %v128 = vunpack.c.l.b16 %v79
    %v129 = vunpack.c.l.b16 %v80
    %v130 = vunpack.c.l.b16 %v81
    %v131 = vunpack.c.l.b16 %v82
    %v132 = vunpack.c.l.b16 %v83
    %v133 = vunpack.c.l.b16 %v84
    %v134 = vunpack.c.l.b16 %v85
    %v135 = vunpack.c.l.b16 %v86
    %v136 = vpack.c.b16 %v121, %v120
    %v137 = vpack.c.b16 %v123, %v122
    %v138 = vpack.c.b16 %v125, %v124
    %v139 = vpack.c.b16 %v127, %v126
    %v140 = vpack.c.b16 %v129, %v128
    %v141 = vpack.c.b16 %v131, %v130
    %v142 = vpack.c.b16 %v133, %v132
    %v143 = vpack.c.b16 %v135, %v134
    %152 = vmatprep.subr.bf16.mxu0 0
    %153 = vmatpush1.bf16.msra.mxu0 %v143
    %154 = vmatprep.subr.bf16.mxu0 0
    %155 = vmatpush1.bf16.msra.mxu0 %v142
    %156 = vmatprep.subr.bf16.mxu0 0
    %157 = vmatpush1.bf16.msra.mxu0 %v141
    %158 = vmatprep.subr.bf16.mxu0 0
    %159 = vmatpush1.bf16.msra.mxu0 %v140
    %160 = vmatprep.subr.bf16.mxu0 0
    %161 = vmatpush1.bf16.msra.mxu0 %v139
    %162 = vmatprep.subr.bf16.mxu0 0
    %163 = vmatpush1.bf16.msra.mxu0 %v138
    %164 = vmatprep.subr.bf16.mxu0 0
    %165 = vmatpush1.bf16.msra.mxu0 %v137
    %166 = vmatprep.subr.bf16.mxu0 0
    %167 = vmatpush1.bf16.msra.mxu0 %v136
    %168 = vmatprep.subr.bf16.mxu0 0
    %169 = vmatpush2.bf16.msra.mxu0 0
    %170 = vmatprep.subr.bf16.mxu0 0
    %171 = vmatpush2.bf16.msra.mxu0 0
    %172 = vmatprep.subr.bf16.mxu0 0
    %173 = vmatpush2.bf16.msra.mxu0 0
    %174 = vmatprep.subr.bf16.mxu0 0
    %175 = vmatpush2.bf16.msra.mxu0 0
    %176 = vmatprep.subr.bf16.mxu0 0
    %177 = vmatpush2.bf16.msra.mxu0 0
    %178 = vmatprep.subr.bf16.mxu0 0
    %179 = vmatpush2.bf16.msra.mxu0 0
    %180 = vmatprep.subr.bf16.mxu0 0
    %181 = vmatpush2.bf16.msra.mxu0 0
    %182 = vmatprep.subr.bf16.mxu0 0
    %183 = vmatpush2.bf16.msra.mxu0 0
    %184 = vmatprep.mubr.bf16.mxu0 0
    %185 = vmatmul.mubr.bf16.gmra.mxu0 %v102
    %v186 = vpop.f32.mrf.mxu0
    %v187 = vadd.f32 %v96, %v186
    %v188 = vpop.f32.mrf.mxu0
    %v189 = vpop.f32.mrf.mxu0
    %v190 = vadd.f32 %v96, %v189
    %v191 = vpop.f32.mrf.mxu0
    %192 = vdwg.mxu0
    %v195 = vunpack.c.l.b16 %v89
    %v196 = vunpack.c.l.b16 %v90
    %v197 = vpack.c.b16 %v196, %v195
    %199 = vmatprep.subr.bf16.mxu0 0
    %200 = vmatpush1.bf16.msra.mxu0 %v143
    %201 = vmatprep.subr.bf16.mxu0 0
    %202 = vmatpush1.bf16.msra.mxu0 %v142
    %203 = vmatprep.subr.bf16.mxu0 0
    %204 = vmatpush1.bf16.msra.mxu0 %v141
    %205 = vmatprep.subr.bf16.mxu0 0
    %206 = vmatpush1.bf16.msra.mxu0 %v140
    %207 = vmatprep.subr.bf16.mxu0 0
    %208 = vmatpush1.bf16.msra.mxu0 %v139
    %209 = vmatprep.subr.bf16.mxu0 0
    %210 = vmatpush1.bf16.msra.mxu0 %v138
    %211 = vmatprep.subr.bf16.mxu0 0
    %212 = vmatpush1.bf16.msra.mxu0 %v137
    %213 = vmatprep.subr.bf16.mxu0 0
    %214 = vmatpush1.bf16.msra.mxu0 %v136
    %215 = vmatprep.subr.bf16.mxu0 0
    %216 = vmatpush2.bf16.msra.mxu0 0
    %217 = vmatprep.subr.bf16.mxu0 0
    %218 = vmatpush2.bf16.msra.mxu0 0
    %219 = vmatprep.subr.bf16.mxu0 0
    %220 = vmatpush2.bf16.msra.mxu0 0
    %221 = vmatprep.subr.bf16.mxu0 0
    %222 = vmatpush2.bf16.msra.mxu0 0
    %223 = vmatprep.subr.bf16.mxu0 0
    %224 = vmatpush2.bf16.msra.mxu0 0
    %225 = vmatprep.subr.bf16.mxu0 0
    %226 = vmatpush2.bf16.msra.mxu0 0
    %227 = vmatprep.subr.bf16.mxu0 0
    %228 = vmatpush2.bf16.msra.mxu0 0
    %229 = vmatprep.subr.bf16.mxu0 0
    %230 = vmatpush2.bf16.msra.mxu0 0
    %231 = vmatprep.mubr.bf16.mxu0 0
    %232 = vmatmul.mubr.bf16.gmra.mxu0 %v197
    %v233 = vpop.f32.mrf.mxu0
    %v234 = vadd.f32 %v96, %v233
    %v235 = vpop.f32.mrf.mxu0
    %v236 = vpop.f32.mrf.mxu0
    %v237 = vadd.f32 %v96, %v236
    %v238 = vpop.f32.mrf.mxu0
    %239 = vdwg.mxu0
    %v240 = vmul.f32 %v187, 0.1
    %v241 = vmul.f32 %v190, 0.1
    %v242 = vmax.f32 %v187, %v240
    %v243 = vmax.f32 %v190, %v241
    %v244 = vmul.f32 %v234, 0.1
    %v245 = vmul.f32 %v237, 0.1
    %v246 = vmax.f32 %v234, %v244
    %v247 = vmax.f32 %v237, %v245
    %v248 = vsub.f32 %v242, %v246
    %v249 = vsub.f32 %v243, %v247
    %v250 = vand.u32 2147483647, %v248
    %v251 = vand.u32 2147483647, %v249
    %v252 = vadd.f32 %v242, %v246
    %v253 = vadd.f32 %v243, %v247
    %v254 = vld [vmem:[%s4] sm:$0x1]
    %v256 = vlaneseq
    %v257 = vshrl.u32 %v256, 7
    %v258 = vsub.s32 0, %v257
    %v259 = vrot.slane %v254, %v258
    %v261 = vmul.f32 %v250, %v259
    %v262 = vmul.f32 %v251, %v259
    %v263 = vld [vmem:[%s5] sm:$0x1]
    %v265 = vlaneseq
    %v266 = vshrl.u32 %v265, 7
    %v267 = vsub.s32 0, %v266
    %v268 = vrot.slane %v263, %v267
    %v270 = vmul.f32 %v252, %v268
    %v271 = vmul.f32 %v253, %v268
    %v272 = vadd.f32 %v261, %v270
    %v273 = vadd.f32 %v262, %v271
    %274 = vadd.xlane.f32.xlu0 %v272
    %v275 = vpop.xlane.xlu0 %274
    %276 = vadd.xlane.f32.xlu0 %v273
    %v277 = vpop.xlane.xlu0 %276
    %v278 = vld [vmem:[#allocation2] sm:$0x1]
    %280 = vset.pattern.permute.xlu0 0
    %281 = vperm.xlu0 %280, %v278
    %v282 = vpop.permute.xlu0 %281
    %v284 = vlaneseq
    %v285 = vshrl.u32 %v284, 7
    %v286 = vsub.s32 0, %v285
    %v287 = vrot.slane %v282, %v286
    %v288 = vadd.f32 %v275, %v287
    %v289 = vadd.f32 %v277, %v287
    %v290 = vxor.u32 %v288, 2147483648
    %v291 = vxor.u32 %v289, 2147483648
    %v292 = vmul.f32 %v290, 1.442695
    %v293 = vpow.pop %v292
    %v294 = vmul.f32 %v291, 1.442695
    %v295 = vpow.pop %v294
    %v296 = vadd.f32 %v293, 1.0
    %v297 = vadd.f32 %v295, 1.0
    %v298 = vrcp.pop %v296
    %v299 = vmul.f32 1.0, %v298
    %v300 = vrcp.pop %v297
    %v301 = vmul.f32 1.0, %v300
    %v302 = vmul.f32 %v299, 3.0
    %v303 = vmul.f32 %v301, 3.0
    %v304 = vadd.f32 %v302, 1.0
    %v305 = vadd.f32 %v303, 1.0
    %v308 = vlaneseq
    %v309 = vand.u32 %v308, 127
    %v310 = vlaneseq
    %v311 = vshrl.u32 %v310, 7
    %v312 = vsub.s32 %v309, %v311
    %v313 = vrot.slane %v304, %v312
    %v314 = vadd.s32 %v309, 4294967288
    %v315 = vlaneseq
    %v316 = vshrl.u32 %v315, 7
    %v317 = vsub.s32 %v314, %v316
    %v318 = vrot.slane %v305, %v317
    %vm319 = vcmask 130112
    %v320 = vsel %vm319, %v318, %v313
    %vm322 = vcmask 122880
    %323 = vst.msk [vmem:[#allocation9] sm:$0x1] %vm322, %v320
    // Predicated region
    $region42: #{tpu_custom_call.1} parent=1 // pred_check
      _
    $region43: #{tpu_custom_call.1} parent=1 // pred_check_branch
      %325 = sbr.rel (0) target = $region45
    $region44: #{tpu_custom_call.1} parent=1 // pred_region
      %s327 = ssub.s32 16, 16
      %328 = vsyncadd [#allocation5], %s327
      %s330 = sshll.u32 [#allocation9], 4
      %s331 = int_to_ptr.vmem [resolvable:$true] %s330
      %333 = dma.vmem_to_hbm [thread:$0]  %s331, 16, %s7, [#allocation5]
    $region45: #{tpu_custom_call.1} parent=1 // pred_fallthru
      _
    // Predicated region
    $region46: #{tpu_custom_call.1} parent=1 // pred_check
      _
    $region47: #{tpu_custom_call.1} parent=1 // pred_check_branch
      %335 = sbr.rel (0) target = $region49
    $region48: #{tpu_custom_call.1} parent=1 // pred_region
      %336 = dma.done [#allocation5], 16
    $region49: #{tpu_custom_call.1} parent=1 // pred_fallthru
      _
    %337 = vsyncpa [#allocation4], 1
    %338 = vsyncpa [#allocation7], 1
    %339 = vsyncpa [#allocation5], 1

</llo_original>
